<compile_context>
chip_gen: v5e
topology: v5e:2x2
jax: 0.10.0
libtpu: 0.0.40
codegen_flags: <defaults>
</compile_context>

<pallas_src>
import functools

import jax
import jax.numpy as jnp
from jax.experimental import pallas as pl
from jax.experimental.pallas import tpu as pltpu


LEAKY_SLOPE = 0.01  # PyTorch nn.LeakyReLU default negative_slope
LANE = 128          # TPU lane width
SUBLANE = 8         # TPU sublane group


def _round_up(x, m):
    return ((x + m - 1) // m) * m


def _choose_tile_m(m, pdims):
    """Batch tile size.

    - Tiny problems (whole batch's live intermediates fit comfortably) -> one grid step
      (launch/DMA overhead dominates; splitting only shrinks MXU M utilization).
    - Otherwise cap tile_m so ~2 * tile_m * max(pdims) * 4B of live f32 intermediates
      stays within a few MiB (avoids vreg/VMEM spills in the unrolled layer loop).
    """
    max_pdim = max(pdims)
    m8 = _round_up(m, SUBLANE)
    if 2 * m8 * max_pdim * 4 <= (2 << 20):        # whole batch in one tile
        return min(m8, 1024)
    cap = (4 << 20) // (2 * max_pdim * 4)         # 2*tile_m*max_pdim*4B <= 4 MiB
    cap = max(SUBLANE, (cap // SUBLANE) * SUBLANE)
    # TODO(synk): on v7x (2 TensorCores) prefer an even number of >=256-row tiles so
    # both cores get equal work and finish together.
    return int(min(1024, cap, m8))


def _fused_mlp_kernel(x_ref, *refs, num_layers):
    """Whole MLP on one batch tile.  refs = (w0, b0, w1, b1, ..., o_ref)."""
    o_ref = refs[-1]
    wb = refs[:-1]

    h = x_ref[...].astype(jnp.float32)
    for l in range(num_layers):                    # static, unrolled layer loop
        w_ref = wb[2 * l]
        b_ref = wb[2 * l + 1]
        # bf16 MXU inputs (weights are already bf16), f32 accumulation.
        y = jnp.dot(h.astype(jnp.bfloat16), w_ref[...],
                    preferred_element_type=jnp.float32)
        y = y + b_ref[...]                         # (1, n_pad) f32 broadcasts over rows
        if l < num_layers - 1:                     # hidden: Identity bn + LeakyReLU
            y = jnp.maximum(y, LEAKY_SLOPE * y)    # mul+max (2 VPU ops)
        h = y
    o_ref[...] = h.astype(o_ref.dtype)


def prepare_params(params, weight_dtype=jnp.bfloat16):
    """One-time pad (feature dims -> multiples of 128 lanes) + cast of weights/biases.

    params: list of (W, b) with W: [in, out], b: [1, out]  (W transposed vs PyTorch).
    Returns (flat_params_tuple, in_dim, out_dim).  Zero padding is semantics-preserving
    (zero rows/cols contribute 0, LeakyReLU(0)=0).
    """
    in_dim = params[0][0].shape[0]
    out_dim = params[-1][0].shape[1]
    dims = [in_dim] + [w.shape[1] for (w, _) in params]
    pdims = [_round_up(d, LANE) for d in dims]

    flat = []
    for l, (w, b) in enumerate(params):
        kp, np_ = pdims[l], pdims[l + 1]
        w_p = jnp.pad(w, ((0, kp - w.shape[0]), (0, np_ - w.shape[1])))
        b_p = jnp.pad(b, ((0, 0), (0, np_ - b.shape[1])))
        flat.append(w_p.astype(weight_dtype))      # bf16 MXU operand, half the VMEM/HBM
        flat.append(b_p.astype(jnp.float32))       # bias stays f32 (added post-matmul)
    return tuple(flat), in_dim, out_dim


@functools.partial(jax.jit, static_argnums=(2, 3))
def _forward_impl(x, flat_params, in_dim, out_dim):
    m = x.shape[0]
    num_layers = len(flat_params) // 2
    pdims = [flat_params[0].shape[0]] + [flat_params[2 * l].shape[1]
                                         for l in range(num_layers)]

    tile_m = _choose_tile_m(m, pdims)
    m_pad = _round_up(m, tile_m)
    grid = (m_pad // tile_m,)

    # Only x is padded per call (weights/biases were prepared once).
    x_p = jnp.pad(x, ((0, m_pad - m), (0, pdims[0] - in_dim)))

    in_specs = [pl.BlockSpec((tile_m, pdims[0]), lambda i: (i, 0))]
    for l in range(num_layers):
        kp, np_ = pdims[l], pdims[l + 1]
        # Grid-invariant weights/biases: constant index_map + single buffer (resident).
        in_specs.append(pl.BlockSpec((kp, np_), lambda i: (0, 0),
                                     pipeline_mode=pl.Buffered(1)))
        in_specs.append(pl.BlockSpec((1, np_), lambda i: (0, 0),
                                     pipeline_mode=pl.Buffered(1)))
        # TODO(synk): once total bf16 weight bytes exceed ~32 MiB (v7x: 64 MiB VMEM/TC),
        # switch from full-weight residency to tiling N ("parallel") and K ("arbitrary",
        # innermost) with an f32 acc scratch and pl.Buffered(2-3) on streamed blocks.

    # Explicit VMEM budget: single-buffered params + live f32 intermediates (h, y)
    # + double-buffered x/out tiles, with ~30% headroom.  Default scoped VMEM is only
    # 16 MiB (v5e) / 32 MiB (v6e/v7x), which larger hidden dims would exceed.
    param_bytes = sum(a.size * a.dtype.itemsize for a in flat_params)
    act_bytes = 2 * tile_m * max(pdims) * 4
    io_bytes = 2 * tile_m * (pdims[0] + pdims[-1]) * 4
    vmem_limit = int(min(100 << 20,
                         max(32 << 20,
                             int(1.3 * (param_bytes + act_bytes + io_bytes)))))

    kernel = functools.partial(_fused_mlp_kernel, num_layers=num_layers)
    y_pad = pl.pallas_call(
        kernel,
        out_shape=jax.ShapeDtypeStruct((m_pad, pdims[-1]), x.dtype),
        grid_spec=pltpu.PrefetchScalarGridSpec(
            num_scalar_prefetch=0,
            grid=grid,
            in_specs=in_specs,
            out_specs=pl.BlockSpec((tile_m, pdims[-1]), lambda i: (i, 0)),
        ),
        compiler_params=pltpu.CompilerParams(
            dimension_semantics=("parallel",),
            vmem_limit_bytes=vmem_limit,
        ),
    )(x_p, *flat_params)

    return y_pad[:m, :out_dim]


def simple_network_forward(x, prepared):
    """for fc, act in hidden: x = leaky_relu(fc(x)); return fc_out(x)."""
    flat_params, in_dim, out_dim = prepared
    return _forward_impl(x, flat_params, in_dim, out_dim)


def init_simple_network_params(key, input_dim, output_dim, hidden_layer_dims,
                               dtype=jnp.float32):
    """Deterministic parameter init (shapes match the nn.Linear layers)."""
    dims = [input_dim] + list(hidden_layer_dims) + [output_dim]
    params = []
    for i in range(len(dims) - 1):
        key, kw, kb = jax.random.split(key, 3)
        bound = 1.0 / float(dims[i]) ** 0.5
        w = jax.random.uniform(kw, (dims[i], dims[i + 1]), dtype, -bound, bound)
        b = jax.random.uniform(kb, (1, dims[i + 1]), dtype, -bound, bound)
        params.append((w, b))
    return params


def _reference_forward(x, params, matmul_dtype=jnp.float32):
    h = x
    for (w, b) in params[:-1]:
        y = jnp.dot(h.astype(matmul_dtype), w.astype(matmul_dtype),
                    preferred_element_type=jnp.float32) + b
        h = jnp.maximum(y, LEAKY_SLOPE * y)
    w, b = params[-1]
    return jnp.dot(h.astype(matmul_dtype), w.astype(matmul_dtype),
                   preferred_element_type=jnp.float32) + b


if __name__ == "__main__":
    key = jax.random.PRNGKey(0)

    batch = 16
    input_dim = 16
    hidden_layer_dims = [32, 32]
    output_dim = 8

    kx, kp = jax.random.split(key)
    x = jax.random.normal(kx, (batch, input_dim), jnp.float32)
    params = init_simple_network_params(kp, input_dim, output_dim,
                                        hidden_layer_dims)

    prepared = prepare_params(params)      # one-time pad + bf16 cast (hoisted)
    out = simple_network_forward(x, prepared)
    out = jax.block_until_ready(out)

    assert out.shape == (batch, output_dim)
    # bf16 MXU inputs => tight check vs a bf16-cast reference, loose vs pure f32.
    ref_bf16 = _reference_forward(x, params, matmul_dtype=jnp.bfloat16)
    ref_f32 = _reference_forward(x, params, matmul_dtype=jnp.float32)
    assert jnp.allclose(out, ref_bf16, atol=1e-2, rtol=1e-2), "mismatch vs bf16 reference"
    assert jnp.allclose(out, ref_f32, atol=5e-2, rtol=5e-2), "mismatch vs f32 reference"

    print("KERNEL_OK")
</pallas_src>

<mosaic_0001>
module attributes {stable_mosaic.version = 11 : i64} {
  func.func @_fused_mlp_kernel(%arg0: i32, %arg1: memref<16x128xf32, #tpu.memory_space<vmem>>, %arg2: memref<128x128xbf16, #tpu.memory_space<vmem>>, %arg3: memref<1x128xf32, #tpu.memory_space<vmem>>, %arg4: memref<128x128xbf16, #tpu.memory_space<vmem>>, %arg5: memref<1x128xf32, #tpu.memory_space<vmem>>, %arg6: memref<128x128xbf16, #tpu.memory_space<vmem>>, %arg7: memref<1x128xf32, #tpu.memory_space<vmem>>, %arg8: memref<16x128xf32, #tpu.memory_space<vmem>>) attributes {dimension_semantics = [#tpu.dimension_semantics<parallel>], iteration_bounds = array<i64: 1>, scalar_prefetch = 0 : i64, scratch_operands = 0 : i64, tpu.core_type = #tpu.core_type<tc>, window_params = [{transform_indices = @transform_0, window_bounds = array<i64: 16, 128>}, {pipeline_mode = #tpu.pipeline_mode<synchronous>, transform_indices = @transform_1, window_bounds = array<i64: 128, 128>}, {pipeline_mode = #tpu.pipeline_mode<synchronous>, transform_indices = @transform_2, window_bounds = array<i64: 1, 128>}, {pipeline_mode = #tpu.pipeline_mode<synchronous>, transform_indices = @transform_3, window_bounds = array<i64: 128, 128>}, {pipeline_mode = #tpu.pipeline_mode<synchronous>, transform_indices = @transform_4, window_bounds = array<i64: 1, 128>}, {pipeline_mode = #tpu.pipeline_mode<synchronous>, transform_indices = @transform_5, window_bounds = array<i64: 128, 128>}, {pipeline_mode = #tpu.pipeline_mode<synchronous>, transform_indices = @transform_6, window_bounds = array<i64: 1, 128>}, {transform_indices = @transform_7, window_bounds = array<i64: 16, 128>}]} {
    %c0 = arith.constant 0 : index
    %c0_0 = arith.constant 0 : index
    %0 = vector.load %arg1[%c0, %c0_0] : memref<16x128xf32, #tpu.memory_space<vmem>>, vector<16x128xf32>
    %1 = arith.truncf %0 : vector<16x128xf32> to vector<16x128xbf16>
    %c0_1 = arith.constant 0 : index
    %c0_2 = arith.constant 0 : index
    %2 = vector.load %arg2[%c0_1, %c0_2] : memref<128x128xbf16, #tpu.memory_space<vmem>>, vector<128x128xbf16>
    %cst = arith.constant dense<0.000000e+00> : vector<16x128xf32>
    %3 = tpu.matmul %1, %2, %cst {dimension_numbers = #tpu.dot_dimension_numbers<[1], [0], [0], [1], [0, 0, 1, 1], [], []>} : vector<16x128xbf16>, vector<128x128xbf16>, vector<16x128xf32> -> vector<16x128xf32>
    %c0_3 = arith.constant 0 : index
    %c0_4 = arith.constant 0 : index
    %4 = vector.load %arg3[%c0_3, %c0_4] : memref<1x128xf32, #tpu.memory_space<vmem>>, vector<1x128xf32>
    %5 = vector.broadcast %4 : vector<1x128xf32> to vector<16x128xf32>
    %6 = arith.addf %3, %5 : vector<16x128xf32>
    %cst_5 = arith.constant 0.00999999977 : f32
    %7 = vector.broadcast %cst_5 : f32 to vector<16x128xf32>
    %8 = arith.mulf %7, %6 : vector<16x128xf32>
    %9 = arith.maximumf %6, %8 : vector<16x128xf32>
    %10 = arith.truncf %9 : vector<16x128xf32> to vector<16x128xbf16>
    %c0_6 = arith.constant 0 : index
    %c0_7 = arith.constant 0 : index
    %11 = vector.load %arg4[%c0_6, %c0_7] : memref<128x128xbf16, #tpu.memory_space<vmem>>, vector<128x128xbf16>
    %cst_8 = arith.constant dense<0.000000e+00> : vector<16x128xf32>
    %12 = tpu.matmul %10, %11, %cst_8 {dimension_numbers = #tpu.dot_dimension_numbers<[1], [0], [0], [1], [0, 0, 1, 1], [], []>} : vector<16x128xbf16>, vector<128x128xbf16>, vector<16x128xf32> -> vector<16x128xf32>
    %c0_9 = arith.constant 0 : index
    %c0_10 = arith.constant 0 : index
    %13 = vector.load %arg5[%c0_9, %c0_10] : memref<1x128xf32, #tpu.memory_space<vmem>>, vector<1x128xf32>
    %14 = vector.broadcast %13 : vector<1x128xf32> to vector<16x128xf32>
    %15 = arith.addf %12, %14 : vector<16x128xf32>
    %cst_11 = arith.constant 0.00999999977 : f32
    %16 = vector.broadcast %cst_11 : f32 to vector<16x128xf32>
    %17 = arith.mulf %16, %15 : vector<16x128xf32>
    %18 = arith.maximumf %15, %17 : vector<16x128xf32>
    %19 = arith.truncf %18 : vector<16x128xf32> to vector<16x128xbf16>
    %c0_12 = arith.constant 0 : index
    %c0_13 = arith.constant 0 : index
    %20 = vector.load %arg6[%c0_12, %c0_13] : memref<128x128xbf16, #tpu.memory_space<vmem>>, vector<128x128xbf16>
    %cst_14 = arith.constant dense<0.000000e+00> : vector<16x128xf32>
    %21 = tpu.matmul %19, %20, %cst_14 {dimension_numbers = #tpu.dot_dimension_numbers<[1], [0], [0], [1], [0, 0, 1, 1], [], []>} : vector<16x128xbf16>, vector<128x128xbf16>, vector<16x128xf32> -> vector<16x128xf32>
    %c0_15 = arith.constant 0 : index
    %c0_16 = arith.constant 0 : index
    %22 = vector.load %arg7[%c0_15, %c0_16] : memref<1x128xf32, #tpu.memory_space<vmem>>, vector<1x128xf32>
    %23 = vector.broadcast %22 : vector<1x128xf32> to vector<16x128xf32>
    %24 = arith.addf %21, %23 : vector<16x128xf32>
    %c0_17 = arith.constant 0 : index
    %c0_18 = arith.constant 0 : index
    %25 = vector.load %arg8[%c0_17, %c0_18] : memref<16x128xf32, #tpu.memory_space<vmem>>, vector<16x128xf32>
    tpu.vector_store %arg8[%c0_17, %c0_18], %24 {strides = array<i32>} : memref<16x128xf32, #tpu.memory_space<vmem>>, vector<16x128xf32>,
    return
  }
  func.func @transform_0(%arg0: i32) -> (i32, i32) {
    %c0_i32 = arith.constant 0 : i32
    %c0_i32_0 = arith.constant 0 : i32
    return %arg0, %c0_i32 : i32, i32
  }
  func.func @transform_1(%arg0: i32) -> (i32, i32) {
    %c0_i32 = arith.constant 0 : i32
    %c0_i32_0 = arith.constant 0 : i32
    %c0_i32_1 = arith.constant 0 : i32
    return %c0_i32, %c0_i32_0 : i32, i32
  }
  func.func @transform_2(%arg0: i32) -> (i32, i32) {
    %c0_i32 = arith.constant 0 : i32
    %c0_i32_0 = arith.constant 0 : i32
    %c0_i32_1 = arith.constant 0 : i32
    return %c0_i32, %c0_i32_0 : i32, i32
  }
  func.func @transform_3(%arg0: i32) -> (i32, i32) {
    %c0_i32 = arith.constant 0 : i32
    %c0_i32_0 = arith.constant 0 : i32
    %c0_i32_1 = arith.constant 0 : i32
    return %c0_i32, %c0_i32_0 : i32, i32
  }
  func.func @transform_4(%arg0: i32) -> (i32, i32) {
    %c0_i32 = arith.constant 0 : i32
    %c0_i32_0 = arith.constant 0 : i32
    %c0_i32_1 = arith.constant 0 : i32
    return %c0_i32, %c0_i32_0 : i32, i32
  }
  func.func @transform_5(%arg0: i32) -> (i32, i32) {
    %c0_i32 = arith.constant 0 : i32
    %c0_i32_0 = arith.constant 0 : i32
    %c0_i32_1 = arith.constant 0 : i32
    return %c0_i32, %c0_i32_0 : i32, i32
  }
  func.func @transform_6(%arg0: i32) -> (i32, i32) {
    %c0_i32 = arith.constant 0 : i32
    %c0_i32_0 = arith.constant 0 : i32
    %c0_i32_1 = arith.constant 0 : i32
    return %c0_i32, %c0_i32_0 : i32, i32
  }
  func.func @transform_7(%arg0: i32) -> (i32, i32) {
    %c0_i32 = arith.constant 0 : i32
    %c0_i32_0 = arith.constant 0 : i32
    return %arg0, %c0_i32 : i32, i32
  }
}

</mosaic_0001>

<llo_original>
// kernel: _forward_impl.1
$region0: #{_forward_impl.1}
  #allocation0 [shape = 'u32[]', space=smem, size = 0x4, offset = 0x4, fixed_abs, tag = 'smem constant byte address 0x4 - core index']
  #allocation1 [shape = 'u32[72,128]{1,0:T(1,128)}', space=vmem, size = 0x9000, scoped, tag = 'internal scratch']
  %s0 = inlined_call_operand.vmem [shape: f32[16,128], index: 0, kind: input, shape index: {}]
  %s1 = inlined_call_operand.hbm [shape: bf16[128,128], index: 1, kind: input, shape index: {}]
  %s2 = inlined_call_operand.vmem [shape: f32[1,128], index: 2, kind: input, shape index: {}]
  %s3 = inlined_call_operand.hbm [shape: bf16[128,128], index: 3, kind: input, shape index: {}]
  %s4 = inlined_call_operand.vmem [shape: f32[1,128], index: 4, kind: input, shape index: {}]
  %s5 = inlined_call_operand.hbm [shape: bf16[128,128], index: 5, kind: input, shape index: {}]
  %s6 = inlined_call_operand.vmem [shape: f32[1,128], index: 6, kind: input, shape index: {}]
  %s7 = inlined_call_operand.vmem [shape: f32[16,128], index: 7, kind: output, shape index: {}]
  %s8 = sld [smem:[#allocation0]]
  $region50: #{_forward_impl.1} parent=0
    _
  %s10 = ssub.s32 1, %s8
  %s11 = scalar_select 0, %s10, %s8
  $region1: #{_forward_impl.1} parent=0
    #allocation2 [shape = 'u8[32768]{0}', space=vmem, size = 0x8000, scoped, tag = 'input window, operand 1, single buffered']
    #allocation3 [shape = 's32[1]{0}', space=sflag, size = 0x4, scoped, tag = 'scoped memory for _forward_impl.1']
    #allocation4 [shape = 'u8[32768]{0}', space=vmem, size = 0x8000, scoped, tag = 'input window, operand 3, single buffered']
    #allocation5 [shape = 's32[1]{0}', space=sflag, size = 0x4, scoped, tag = 'scoped memory for _forward_impl.1']
    #allocation6 [shape = 'u8[32768]{0}', space=vmem, size = 0x8000, scoped, tag = 'input window, operand 5, single buffered']
    %12 = vsyncpa [#allocation3], 0
    %13 = vsyncpa [#allocation5], 0
    // Predicated region
    $region2: #{_forward_impl.1} parent=1 // pred_check
      _
    $region3: #{_forward_impl.1} parent=1 // pred_check_branch
      %15 = sbr.rel (0) target = $region5
    $region4: #{_forward_impl.1} parent=1 // pred_region
      _
    $region5: #{_forward_impl.1} parent=1 // pred_fallthru
      _
    // Predicated region
    $region6: #{_forward_impl.1} parent=1 // pred_check
      _
    $region7: #{_forward_impl.1} parent=1 // pred_check_branch
      %17 = sbr.rel (0) target = $region9
    $region8: #{_forward_impl.1} parent=1 // pred_region
      %19 = vsyncadd [#allocation3], 0
      %s20 = sshll.u32 %s1, 4
      %s21 = int_to_ptr.hbm [resolvable:$true] %s20
      %s22 = sshll.u32 [#allocation2], 4
      %s23 = int_to_ptr.vmem [resolvable:$true] %s22
      %28 = dma.hbm_to_vmem [thread:$0]  %s21, 1024, %s23, [#allocation3], 64, 64, 4
    $region9: #{_forward_impl.1} parent=1 // pred_fallthru
      _
    // Predicated region
    $region10: #{_forward_impl.1} parent=1 // pred_check
      _
    $region11: #{_forward_impl.1} parent=1 // pred_check_branch
      %30 = sbr.rel (0) target = $region13
    $region12: #{_forward_impl.1} parent=1 // pred_region
      _
    $region13: #{_forward_impl.1} parent=1 // pred_fallthru
      _
    // Predicated region
    $region14: #{_forward_impl.1} parent=1 // pred_check
      _
    $region15: #{_forward_impl.1} parent=1 // pred_check_branch
      %32 = sbr.rel (0) target = $region17
    $region16: #{_forward_impl.1} parent=1 // pred_region
      %34 = vsyncadd [#allocation5], 0
      %s35 = sshll.u32 %s3, 4
      %s36 = int_to_ptr.hbm [resolvable:$true] %s35
      %s37 = sshll.u32 [#allocation4], 4
      %s38 = int_to_ptr.vmem [resolvable:$true] %s37
      %43 = dma.hbm_to_vmem [thread:$0]  %s36, 1024, %s38, [#allocation5], 64, 64, 4
    $region17: #{_forward_impl.1} parent=1 // pred_fallthru
      _
    // Predicated region
    $region18: #{_forward_impl.1} parent=1 // pred_check
      _
    $region19: #{_forward_impl.1} parent=1 // pred_check_branch
      %45 = sbr.rel (0) target = $region21
    $region20: #{_forward_impl.1} parent=1 // pred_region
      _
    $region21: #{_forward_impl.1} parent=1 // pred_fallthru
      _
    // Predicated region
    $region22: #{_forward_impl.1} parent=1 // pred_check
      _
    $region23: #{_forward_impl.1} parent=1 // pred_check_branch
      %47 = sbr.rel (0) target = $region25
    $region24: #{_forward_impl.1} parent=1 // pred_region
      %49 = vsyncadd [#allocation5], 0
      %s50 = sshll.u32 %s5, 4
      %s51 = int_to_ptr.hbm [resolvable:$true] %s50
      %s52 = sshll.u32 [#allocation6], 4
      %s53 = int_to_ptr.vmem [resolvable:$true] %s52
      %58 = dma.hbm_to_vmem [thread:$0]  %s51, 1024, %s53, [#allocation5], 64, 64, 4
    $region25: #{_forward_impl.1} parent=1 // pred_fallthru
      _
    // Predicated region
    $region26: #{_forward_impl.1} parent=1 // pred_check
      _
    $region27: #{_forward_impl.1} parent=1 // pred_check_branch
      %60 = sbr.rel (0) target = $region29
    $region28: #{_forward_impl.1} parent=1 // pred_region
      _
    $region29: #{_forward_impl.1} parent=1 // pred_fallthru
      _
    // Predicated region
    $region30: #{_forward_impl.1} parent=1 // pred_check
      _
    $region31: #{_forward_impl.1} parent=1 // pred_check_branch
      %62 = sbr.rel (0) target = $region33
    $region32: #{_forward_impl.1} parent=1 // pred_region
      %64 = dma.done [#allocation3], 1024
    $region33: #{_forward_impl.1} parent=1 // pred_fallthru
      _
    // Predicated region
    $region34: #{_forward_impl.1} parent=1 // pred_check
      _
    $region35: #{_forward_impl.1} parent=1 // pred_check_branch
      %66 = sbr.rel (0) target = $region37
    $region36: #{_forward_impl.1} parent=1 // pred_region
      %68 = dma.done [#allocation5], 1024
    $region37: #{_forward_impl.1} parent=1 // pred_fallthru
      _
    // Predicated region
    $region38: #{_forward_impl.1} parent=1 // pred_check
      _
    $region39: #{_forward_impl.1} parent=1 // pred_check_branch
      %70 = sbr.rel (0) target = $region41
    $region40: #{_forward_impl.1} parent=1 // pred_region
      %72 = dma.done [#allocation5], 1024
    $region41: #{_forward_impl.1} parent=1 // pred_fallthru
      _
    %v73 = vld [vmem:[%s0] sm:$0xff]
    %v74 = vld [vmem:[%s0 + $0x8] sm:$0xff]
    %v75 = vpack.c.bf16 %v74, %v73
    %v76 = vld [vmem:[#allocation2] sm:$0xf]
    %v77 = vld [vmem:[#allocation2 + $0x4] sm:$0xf]
    %v78 = vld [vmem:[#allocation2 + $0x8] sm:$0xf]
    %v79 = vld [vmem:[#allocation2 + $0xc] sm:$0xf]
    %v80 = vld [vmem:[#allocation2 + $0x10] sm:$0xf]
    %v81 = vld [vmem:[#allocation2 + $0x14] sm:$0xf]
    %v82 = vld [vmem:[#allocation2 + $0x18] sm:$0xf]
    %v83 = vld [vmem:[#allocation2 + $0x1c] sm:$0xf]
    %v84 = vld [vmem:[#allocation2 + $0x20] sm:$0xf]
    %v85 = vld [vmem:[#allocation2 + $0x24] sm:$0xf]
    %v86 = vld [vmem:[#allocation2 + $0x28] sm:$0xf]
    %v87 = vld [vmem:[#allocation2 + $0x2c] sm:$0xf]
    %v88 = vld [vmem:[#allocation2 + $0x30] sm:$0xf]
    %v89 = vld [vmem:[#allocation2 + $0x34] sm:$0xf]
    %v90 = vld [vmem:[#allocation2 + $0x38] sm:$0xf]
    %v91 = vld [vmem:[#allocation2 + $0x3c] sm:$0xf]
    %v92 = vld [vmem:[%s2] sm:$0x1]
    %v94 = vperm.slane %v92, 0
    %v112 = vunpack.c.l.b16 %v76
    %v113 = vunpack.c.l.b16 %v77
    %v114 = vunpack.c.l.b16 %v78
    %v115 = vunpack.c.l.b16 %v79
    %v116 = vunpack.c.l.b16 %v80
    %v117 = vunpack.c.l.b16 %v81
    %v118 = vunpack.c.l.b16 %v82
    %v119 = vunpack.c.l.b16 %v83
    %v120 = vunpack.c.l.b16 %v84
    %v121 = vunpack.c.l.b16 %v85
    %v122 = vunpack.c.l.b16 %v86
    %v123 = vunpack.c.l.b16 %v87
    %v124 = vunpack.c.l.b16 %v88
    %v125 = vunpack.c.l.b16 %v89
    %v126 = vunpack.c.l.b16 %v90
    %v127 = vunpack.c.l.b16 %v91
    %v128 = vpack.c.b16 %v113, %v112
    %v129 = vpack.c.b16 %v115, %v114
    %v130 = vpack.c.b16 %v117, %v116
    %v131 = vpack.c.b16 %v119, %v118
    %v132 = vpack.c.b16 %v121, %v120
    %v133 = vpack.c.b16 %v123, %v122
    %v134 = vpack.c.b16 %v125, %v124
    %v135 = vpack.c.b16 %v127, %v126
    %144 = vmatpush.bf16.msra.mxu0 %v135
    %145 = vmatpush.bf16.msra.mxu0 %v134
    %146 = vmatpush.bf16.msra.mxu0 %v133
    %147 = vmatpush.bf16.msra.mxu0 %v132
    %148 = vmatpush.bf16.msra.mxu0 %v131
    %149 = vmatpush.bf16.msra.mxu0 %v130
    %150 = vmatpush.bf16.msra.mxu0 %v129
    %151 = vmatpush.bf16.msra.mxu0 %v128
    %152 = vmatmul.bf16.gmra.mxu0 %v75
    %v153 = vpop.f32.mrf.mxu0
    %v154 = vadd.f32 %v94, %v153
    %v155 = vpop.f32.mrf.mxu0
    %v156 = vadd.f32 %v94, %v155
    %157 = vdwg.mxu0
    %v158 = vmul.f32 %v154, 0.01
    %v159 = vmul.f32 %v156, 0.01
    %v160 = vmax.f32 %v154, %v158
    %v161 = vmax.f32 %v156, %v159
    %v162 = vpack.c.bf16 %v161, %v160
    %v163 = vld [vmem:[#allocation4] sm:$0xf]
    %v164 = vld [vmem:[#allocation4 + $0x4] sm:$0xf]
    %v165 = vld [vmem:[#allocation4 + $0x8] sm:$0xf]
    %v166 = vld [vmem:[#allocation4 + $0xc] sm:$0xf]
    %v167 = vld [vmem:[#allocation4 + $0x10] sm:$0xf]
    %v168 = vld [vmem:[#allocation4 + $0x14] sm:$0xf]
    %v169 = vld [vmem:[#allocation4 + $0x18] sm:$0xf]
    %v170 = vld [vmem:[#allocation4 + $0x1c] sm:$0xf]
    %v171 = vld [vmem:[#allocation4 + $0x20] sm:$0xf]
    %v172 = vld [vmem:[#allocation4 + $0x24] sm:$0xf]
    %v173 = vld [vmem:[#allocation4 + $0x28] sm:$0xf]
    %v174 = vld [vmem:[#allocation4 + $0x2c] sm:$0xf]
    %v175 = vld [vmem:[#allocation4 + $0x30] sm:$0xf]
    %v176 = vld [vmem:[#allocation4 + $0x34] sm:$0xf]
    %v177 = vld [vmem:[#allocation4 + $0x38] sm:$0xf]
    %v178 = vld [vmem:[#allocation4 + $0x3c] sm:$0xf]
    %v179 = vld [vmem:[%s4] sm:$0x1]
    %v181 = vperm.slane %v179, 0
    %v199 = vunpack.c.l.b16 %v163
    %v200 = vunpack.c.l.b16 %v164
    %v201 = vunpack.c.l.b16 %v165
    %v202 = vunpack.c.l.b16 %v166
    %v203 = vunpack.c.l.b16 %v167
    %v204 = vunpack.c.l.b16 %v168
    %v205 = vunpack.c.l.b16 %v169
    %v206 = vunpack.c.l.b16 %v170
    %v207 = vunpack.c.l.b16 %v171
    %v208 = vunpack.c.l.b16 %v172
    %v209 = vunpack.c.l.b16 %v173
    %v210 = vunpack.c.l.b16 %v174
    %v211 = vunpack.c.l.b16 %v175
    %v212 = vunpack.c.l.b16 %v176
    %v213 = vunpack.c.l.b16 %v177
    %v214 = vunpack.c.l.b16 %v178
    %v215 = vpack.c.b16 %v200, %v199
    %v216 = vpack.c.b16 %v202, %v201
    %v217 = vpack.c.b16 %v204, %v203
    %v218 = vpack.c.b16 %v206, %v205
    %v219 = vpack.c.b16 %v208, %v207
    %v220 = vpack.c.b16 %v210, %v209
    %v221 = vpack.c.b16 %v212, %v211
    %v222 = vpack.c.b16 %v214, %v213
    %231 = vmatpush.bf16.msra.mxu0 %v222
    %232 = vmatpush.bf16.msra.mxu0 %v221
    %233 = vmatpush.bf16.msra.mxu0 %v220
    %234 = vmatpush.bf16.msra.mxu0 %v219
    %235 = vmatpush.bf16.msra.mxu0 %v218
    %236 = vmatpush.bf16.msra.mxu0 %v217
    %237 = vmatpush.bf16.msra.mxu0 %v216
    %238 = vmatpush.bf16.msra.mxu0 %v215
    %239 = vmatmul.bf16.gmra.mxu0 %v162
    %v240 = vpop.f32.mrf.mxu0
    %v241 = vadd.f32 %v181, %v240
    %v242 = vpop.f32.mrf.mxu0
    %v243 = vadd.f32 %v181, %v242
    %244 = vdwg.mxu0
    %v245 = vmul.f32 %v241, 0.01
    %v246 = vmul.f32 %v243, 0.01
    %v247 = vmax.f32 %v241, %v245
    %v248 = vmax.f32 %v243, %v246
    %v249 = vpack.c.bf16 %v248, %v247
    %v250 = vld [vmem:[#allocation6] sm:$0xf]
    %v251 = vld [vmem:[#allocation6 + $0x4] sm:$0xf]
    %v252 = vld [vmem:[#allocation6 + $0x8] sm:$0xf]
    %v253 = vld [vmem:[#allocation6 + $0xc] sm:$0xf]
    %v254 = vld [vmem:[#allocation6 + $0x10] sm:$0xf]
    %v255 = vld [vmem:[#allocation6 + $0x14] sm:$0xf]
    %v256 = vld [vmem:[#allocation6 + $0x18] sm:$0xf]
    %v257 = vld [vmem:[#allocation6 + $0x1c] sm:$0xf]
    %v258 = vld [vmem:[#allocation6 + $0x20] sm:$0xf]
    %v259 = vld [vmem:[#allocation6 + $0x24] sm:$0xf]
    %v260 = vld [vmem:[#allocation6 + $0x28] sm:$0xf]
    %v261 = vld [vmem:[#allocation6 + $0x2c] sm:$0xf]
    %v262 = vld [vmem:[#allocation6 + $0x30] sm:$0xf]
    %v263 = vld [vmem:[#allocation6 + $0x34] sm:$0xf]
    %v264 = vld [vmem:[#allocation6 + $0x38] sm:$0xf]
    %v265 = vld [vmem:[#allocation6 + $0x3c] sm:$0xf]
    %v266 = vld [vmem:[%s6] sm:$0x1]
    %v268 = vperm.slane %v266, 0
    %v286 = vunpack.c.l.b16 %v250
    %v287 = vunpack.c.l.b16 %v251
    %v288 = vunpack.c.l.b16 %v252
    %v289 = vunpack.c.l.b16 %v253
    %v290 = vunpack.c.l.b16 %v254
    %v291 = vunpack.c.l.b16 %v255
    %v292 = vunpack.c.l.b16 %v256
    %v293 = vunpack.c.l.b16 %v257
    %v294 = vunpack.c.l.b16 %v258
    %v295 = vunpack.c.l.b16 %v259
    %v296 = vunpack.c.l.b16 %v260
    %v297 = vunpack.c.l.b16 %v261
    %v298 = vunpack.c.l.b16 %v262
    %v299 = vunpack.c.l.b16 %v263
    %v300 = vunpack.c.l.b16 %v264
    %v301 = vunpack.c.l.b16 %v265
    %v302 = vpack.c.b16 %v287, %v286
    %v303 = vpack.c.b16 %v289, %v288
    %v304 = vpack.c.b16 %v291, %v290
    %v305 = vpack.c.b16 %v293, %v292
    %v306 = vpack.c.b16 %v295, %v294
    %v307 = vpack.c.b16 %v297, %v296
    %v308 = vpack.c.b16 %v299, %v298
    %v309 = vpack.c.b16 %v301, %v300
    %318 = vmatpush.bf16.msra.mxu0 %v309
    %319 = vmatpush.bf16.msra.mxu0 %v308
    %320 = vmatpush.bf16.msra.mxu0 %v307
    %321 = vmatpush.bf16.msra.mxu0 %v306
    %322 = vmatpush.bf16.msra.mxu0 %v305
    %323 = vmatpush.bf16.msra.mxu0 %v304
    %324 = vmatpush.bf16.msra.mxu0 %v303
    %325 = vmatpush.bf16.msra.mxu0 %v302
    %326 = vmatmul.bf16.gmra.mxu0 %v249
    %v327 = vpop.f32.mrf.mxu0
    %v328 = vadd.f32 %v268, %v327
    %v329 = vpop.f32.mrf.mxu0
    %v330 = vadd.f32 %v268, %v329
    %331 = vdwg.mxu0
    %332 = vst [vmem:[%s7] sm:$0xff] %v328
    %333 = vst [vmem:[%s7 + $0x8] sm:$0xff] %v330
    // Predicated region
    $region42: #{_forward_impl.1} parent=1 // pred_check
      _
    $region43: #{_forward_impl.1} parent=1 // pred_check_branch
      %335 = sbr.rel (0) target = $region45
    $region44: #{_forward_impl.1} parent=1 // pred_region
      _
    $region45: #{_forward_impl.1} parent=1 // pred_fallthru
      _
    // Predicated region
    $region46: #{_forward_impl.1} parent=1 // pred_check
      _
    $region47: #{_forward_impl.1} parent=1 // pred_check_branch
      %337 = sbr.rel (0) target = $region49
    $region48: #{_forward_impl.1} parent=1 // pred_region
      _
    $region49: #{_forward_impl.1} parent=1 // pred_fallthru
      _
    %338 = vsyncpa [#allocation3], 1
    %339 = vsyncpa [#allocation5], 1

</llo_original>
